<compile_context>
chip_gen: v7x
topology: tpu7x:2x2x1
jax: 0.10.0
libtpu: 0.0.40
codegen_flags: <defaults>
</compile_context>

<pallas_src>
import functools

import numpy as np
import jax
import jax.numpy as jnp
from jax import lax
from jax.experimental import pallas as pl
from jax.experimental.pallas import tpu as pltpu

_LANE = 128
_SUBLANE = 8
_CLS_ON_LANES_MIN_C = 128     # 2-D inputs with C >= this keep classes on lanes
_TILE_C_MAX = 1024            # class-chunk width for the classes-on-lanes path


def _round_up(x, m):
    return (x + m - 1) // m * m


def _cdiv(a, b):
    return -(-a // b)


def _chip_config():
    """(target block bytes, vmem_limit_bytes) tuned per TPU generation."""
    kind = ""
    try:
        d = jax.devices()[0]
        if d.platform == "tpu":
            kind = d.device_kind.lower()
    except Exception:  # pragma: no cover - defensive
        kind = ""
    if (not kind) or ("v7" in kind) or ("7x" in kind):
        vmem_limit = 32 * 1024 * 1024      # v7x: 64 MiB physical, 32 MiB scoped
    else:
        vmem_limit = 64 * 1024 * 1024      # v4/v5e/v5p/v6e: 128 MiB physical
    return vmem_limit // 8, vmem_limit


# ---------------------------------------------------------------------------
# Path S: "samples on lanes" layout (B, C, L); classes on sublanes.
# Used for ndim > 2 inputs and for 2-D inputs with small C (transposed).
# ---------------------------------------------------------------------------
def _acc_kernel_samples_on_lanes(pred_ref, gt_ref, out_ref, *, n_b, n_l, bt, lt, c):
    i = pl.program_id(0)
    j = pl.program_id(1)
    pred = pred_ref[...]                               # (bt, c, lt) native dtype
    gt = gt_ref[...]                                   # (bt, 1, lt) int32

    # argmax over the class (sublane) axis; first occurrence on ties, NaN wins
    # (matches torch.argmax: NaN treated as the maximum).
    maxv = jnp.max(pred, axis=1, keepdims=True)                        # (bt,1,lt)
    cand = (pred == maxv) | (pred != pred)                             # NaN -> True
    cls = lax.broadcasted_iota(jnp.int32, pred.shape, 1)
    first = jnp.min(jnp.where(cand, cls, jnp.int32(c)),
                    axis=1, keepdims=True)                             # (bt,1,lt)

    # mask padded lanes / padded batch rows of ragged edge blocks
    lane = lax.broadcasted_iota(jnp.int32, first.shape, 2) + j * lt
    brow = lax.broadcasted_iota(jnp.int32, first.shape, 0) + i * bt
    match = ((first == gt) & (lane < n_l) & (brow < n_b)).astype(jnp.int32)
    out_ref[...] = jnp.broadcast_to(jnp.sum(match, dtype=jnp.int32), out_ref.shape)


def _accuracy_samples_on_lanes(pred3, gt3, total):
    b, c, l = (int(s) for s in pred3.shape)
    itemsize = pred3.dtype.itemsize
    target, vmem_limit = _chip_config()

    # bytes per (batch row, lane column) in VMEM: pred (sublane-padded) + gt
    sub_mult = max(_SUBLANE, 32 // max(itemsize, 1))
    c_pad = _round_up(c, sub_mult)
    col_bytes = c_pad * itemsize + _SUBLANE * 4

    if l <= _LANE:
        lt = l                                          # full extent (legal)
    else:
        lt = max(_LANE, (target // col_bytes) // _LANE * _LANE)
        lt = min(lt, _round_up(l, _LANE))
    bt = max(1, target // (col_bytes * max(lt, 1)))
    bt = min(bt, b)

    # guarantee >= 2 grid steps when possible (v7x has 2 TensorCores)
    if _cdiv(b, bt) * _cdiv(l, lt) == 1:
        if l > _LANE:
            lt = _round_up(_cdiv(l, 2), _LANE)
        elif b > 1:
            bt = _cdiv(b, 2)
    nb, nl = _cdiv(b, bt), _cdiv(l, lt)

    kernel = functools.partial(_acc_kernel_samples_on_lanes,
                               n_b=b, n_l=l, bt=bt, lt=lt, c=c)
    partials = pl.pallas_call(
        kernel,
        out_shape=jax.ShapeDtypeStruct((nb, nl, _SUBLANE, _LANE), jnp.int32),
        grid=(nb, nl),
        in_specs=[
            pl.BlockSpec((bt, c, lt), lambda i, j: (i, 0, j)),   # pred (native)
            pl.BlockSpec((bt, 1, lt), lambda i, j: (i, 0, j)),   # gt  (lane-dense)
        ],
        out_specs=pl.BlockSpec((1, 1, _SUBLANE, _LANE), lambda i, j: (i, j, 0, 0)),
        compiler_params=pltpu.CompilerParams(
            dimension_semantics=("parallel", "parallel"),
            vmem_limit_bytes=vmem_limit,
        ),
        cost_estimate=pl.CostEstimate(
            flops=3 * b * c * l,
            transcendentals=0,
            bytes_accessed=pred3.size * itemsize + gt3.size * 4
            + nb * nl * _SUBLANE * _LANE * 4,
        ),
    )(pred3, gt3)
    correct = jnp.sum(partials[:, :, 0, 0])             # exact int32 count
    return correct.astype(jnp.float32) / jnp.float32(total)


# ---------------------------------------------------------------------------
# Path L: "classes on lanes" layout (N, C) for large C, with class-axis tiling
# and a fused running (max, argmax) scan carried in VMEM scratch.
# ---------------------------------------------------------------------------
def _acc_kernel_classes_on_lanes(pred_ref, gt_ref, out_ref, run_max, run_idx,
                                 *, n_rows, tile_n, tile_c, c):
    i = pl.program_id(0)
    k = pl.program_id(1)

    @pl.when(k == 0)
    def _():
        run_max[...] = jnp.full(run_max.shape, -jnp.inf, jnp.float32)
        run_idx[...] = jnp.zeros(run_idx.shape, jnp.int32)

    pred = pred_ref[...]                                # (tile_n, tile_c) native
    col = lax.broadcasted_iota(jnp.int32, pred.shape, 1) + k * tile_c
    neg = jnp.array(-jnp.inf, dtype=pred.dtype)
    x = jnp.where(col < c, pred, neg)                   # mask ragged class cols

    # per-chunk argmax (first occurrence; NaN wins, torch semantics)
    cmax = jnp.max(x, axis=1, keepdims=True)            # (tile_n, 1) native
    cand = (x == cmax) | (x != x)
    carg = jnp.min(jnp.where(cand, col, jnp.int32(c)), axis=1, keepdims=True)

    # fused running (max, argmax) across class chunks; strict '>' keeps the
    # earliest chunk on ties (first-occurrence).  NaN chunk-max -> +inf.
    cval = jnp.where(cmax != cmax, jnp.inf, cmax.astype(jnp.float32))
    better = cval > run_max[...]
    run_idx[...] = jnp.where(better, carg, run_idx[...])
    run_max[...] = jnp.where(better, cval, run_max[...])

    @pl.when(k == pl.num_programs(1) - 1)
    def _():
        row = lax.broadcasted_iota(jnp.int32, (tile_n, 1), 0) + i * tile_n
        match = ((run_idx[...] == gt_ref[...]) & (row < n_rows)).astype(jnp.int32)
        out_ref[...] = jnp.broadcast_to(jnp.sum(match, dtype=jnp.int32),
                                        out_ref.shape)


def _accuracy_classes_on_lanes(pred2, gt2):
    n, c = (int(s) for s in pred2.shape)
    itemsize = pred2.dtype.itemsize
    target, vmem_limit = _chip_config()

    c_pad = _round_up(c, _LANE)
    tile_c = min(_TILE_C_MAX, c_pad)
    if tile_c >= c:
        tile_c = c                                       # single chunk, full extent

    row_bytes = _round_up(tile_c, _LANE) * itemsize + 2048  # pred + gt + scratch
    tile_n = max(_SUBLANE, (target // row_bytes) // _SUBLANE * _SUBLANE)
    tile_n = min(tile_n, _round_up(n, _SUBLANE))
    # guarantee >= 2 row tiles when possible (v7x two-TC sharding)
    if _cdiv(n, tile_n) == 1 and n > _SUBLANE:
        tile_n = _round_up(_cdiv(n, 2), _SUBLANE)
    num_rows = _cdiv(n, tile_n)
    num_k = _cdiv(c, tile_c)

    kernel = functools.partial(_acc_kernel_classes_on_lanes,
                               n_rows=n, tile_n=tile_n, tile_c=tile_c, c=c)
    partials = pl.pallas_call(
        kernel,
        out_shape=jax.ShapeDtypeStruct((num_rows, _SUBLANE, _LANE), jnp.int32),
        grid=(num_rows, num_k),
        in_specs=[
            pl.BlockSpec((tile_n, tile_c), lambda i, k: (i, k)),   # pred chunk
            pl.BlockSpec((tile_n, 1), lambda i, k: (i, 0)),        # gt (resident)
        ],
        out_specs=pl.BlockSpec((1, _SUBLANE, _LANE), lambda i, k: (i, 0, 0)),
        scratch_shapes=[
            pltpu.VMEM((tile_n, 1), jnp.float32),   # running max
            pltpu.VMEM((tile_n, 1), jnp.int32),     # running argmax
        ],
        compiler_params=pltpu.CompilerParams(
            dimension_semantics=("parallel", "arbitrary"),
            vmem_limit_bytes=vmem_limit,
        ),
        cost_estimate=pl.CostEstimate(
            flops=4 * n * c,
            transcendentals=0,
            bytes_accessed=pred2.size * itemsize + gt2.size * 4
            + num_rows * _SUBLANE * _LANE * 4,
        ),
    )(pred2, gt2)
    correct = jnp.sum(partials[:, 0, 0])                 # exact int32 count
    return correct.astype(jnp.float32) / jnp.float32(n)


# ---------------------------------------------------------------------------
# Public wrapper (same semantics as torch ClassificationAccuracy.forward)
# ---------------------------------------------------------------------------
def classification_accuracy(pred, gt):
    """mean((argmax(pred, axis=1) == gt).float()); pred (N,C,*S), gt (N,*S)."""
    pred = jnp.asarray(pred)
    if not jnp.issubdtype(pred.dtype, jnp.floating):
        pred = pred.astype(jnp.float32)
    gt = jnp.asarray(gt, jnp.int32)
    if pred.ndim < 2:
        raise ValueError("pred must have rank >= 2 (N, C, ...)")
    n, c = int(pred.shape[0]), int(pred.shape[1])

    if pred.ndim == 2:
        if c >= _CLS_ON_LANES_MIN_C:
            # large C: classes stay on lanes (lane-dense), class axis is tiled
            return _accuracy_classes_on_lanes(pred, gt.reshape(n, 1))
        # small C: one cheap transpose -> samples on lanes, classes on sublanes
        pred3 = jnp.transpose(pred, (1, 0)).reshape(1, c, n)
        gt3 = gt.reshape(1, 1, n)
        return _accuracy_samples_on_lanes(pred3, gt3, total=n)

    hw = 1
    for d in pred.shape[2:]:
        hw *= int(d)
    pred3 = pred.reshape(n, c, hw)          # class axis stays dim 1; no transpose
    gt3 = gt.reshape(n, 1, hw)
    return _accuracy_samples_on_lanes(pred3, gt3, total=n * hw)


if __name__ == "__main__":
    key = jax.random.PRNGKey(0)
    k1, k2, k3, k4, k5, k6 = jax.random.split(key, 6)

    def ref_acc(p, g):
        p = np.asarray(p, dtype=np.float32)     # exact for f32/bf16; keeps NaN
        g = np.asarray(g)
        return float((np.argmax(p, axis=1) == g).mean())

    # 1) 2-D classification head, small C (samples-on-lanes path), with a NaN
    N, C = 8, 10
    pred2 = jax.random.normal(k1, (N, C), dtype=jnp.float32)
    pred2 = pred2.at[1, 0].set(jnp.nan)          # torch argmax: NaN treated as max
    gt2 = jax.random.randint(k2, (N,), 0, C, dtype=jnp.int32)
    acc2 = jax.block_until_ready(classification_accuracy(pred2, gt2))
    r2 = ref_acc(pred2, gt2)
    assert abs(float(acc2) - r2) < 1e-6, (float(acc2), r2)

    # 2) dense (segmentation-style) case: pred (N, C, H, W), gt (N, H, W)
    Nn, Cc, H, W = 2, 4, 16, 16
    pred4 = jax.random.normal(k3, (Nn, Cc, H, W), dtype=jnp.float32)
    gt4 = jax.random.randint(k4, (Nn, H, W), 0, Cc, dtype=jnp.int32)
    acc4 = jax.block_until_ready(classification_accuracy(pred4, gt4))
    r4 = ref_acc(pred4, gt4)
    assert abs(float(acc4) - r4) < 1e-6, (float(acc4), r4)

    # 3) large-C bf16 logits: classes-on-lanes path, multi class-chunk,
    #    ragged row and ragged class tiles
    Nb, Cb = 37, 1280
    predb = jax.random.normal(k5, (Nb, Cb), dtype=jnp.float32).astype(jnp.bfloat16)
    gtb = jax.random.randint(k6, (Nb,), 0, Cb, dtype=jnp.int32)
    accb = jax.block_until_ready(classification_accuracy(predb, gtb))
    rb = ref_acc(predb, gtb)
    assert abs(float(accb) - rb) < 1e-6, (float(accb), rb)

    print("KERNEL_OK")
</pallas_src>

<mosaic_0001>
module attributes {stable_mosaic.version = 11 : i64} {
  func.func @_acc_kernel_samples_on_lanes(%arg0: i32, %arg1: i32, %arg2: memref<1x10x8xf32, #tpu.memory_space<vmem>>, %arg3: memref<1x1x8xi32, #tpu.memory_space<vmem>>, %arg4: memref<1x1x8x128xi32, #tpu.memory_space<vmem>>) attributes {dimension_semantics = [#tpu.dimension_semantics<parallel>, #tpu.dimension_semantics<parallel>], iteration_bounds = array<i64: 1, 1>, scalar_prefetch = 0 : i64, scratch_operands = 0 : i64, tpu.core_type = #tpu.core_type<tc>, window_params = [{transform_indices = @transform_0, window_bounds = array<i64: 1, 10, 8>}, {transform_indices = @transform_1, window_bounds = array<i64: 1, 1, 8>}, {transform_indices = @transform_2, window_bounds = array<i64: 1, 1, 8, 128>}]} {
    %c0 = arith.constant 0 : index
    %c0_0 = arith.constant 0 : index
    %c0_1 = arith.constant 0 : index
    %0 = vector.load %arg2[%c0, %c0_0, %c0_1] : memref<1x10x8xf32, #tpu.memory_space<vmem>>, vector<1x10x8xf32>
    %c0_2 = arith.constant 0 : index
    %c0_3 = arith.constant 0 : index
    %c0_4 = arith.constant 0 : index
    %1 = vector.load %arg3[%c0_2, %c0_3, %c0_4] : memref<1x1x8xi32, #tpu.memory_space<vmem>>, vector<1x1x8xi32>
    %cst = arith.constant dense<0xFF800000> : vector<1x8xf32>
    %2 = vector.multi_reduction <maximumf>, %0, %cst [1] : vector<1x10x8xf32> to vector<1x8xf32>
    %3 = vector.shape_cast %2 : vector<1x8xf32> to vector<1x1x8xf32>
    %4 = vector.broadcast %3 : vector<1x1x8xf32> to vector<1x10x8xf32>
    %5 = arith.cmpf oeq, %0, %4 : vector<1x10x8xf32>
    %6 = arith.cmpf one, %0, %0 : vector<1x10x8xf32>
    %7 = arith.ori %5, %6 : vector<1x10x8xi1>
    %8 = tpu.iota {dimensions = array<i32: 1>} : vector<1x10x8xi32>
    %c10_i32 = arith.constant 10 : i32
    %9 = vector.broadcast %c10_i32 : i32 to vector<1x10x8xi32>
    %10 = arith.select %7, %8, %9 : vector<1x10x8xi1>, vector<1x10x8xi32>
    %cst_5 = arith.constant dense<2147483647> : vector<1x8xi32>
    %11 = vector.multi_reduction <minsi>, %10, %cst_5 [1] : vector<1x10x8xi32> to vector<1x8xi32>
    %12 = vector.shape_cast %11 : vector<1x8xi32> to vector<1x1x8xi32>
    %13 = tpu.iota {dimensions = array<i32: 2>} : vector<1x1x8xi32>
    %c8_i32 = arith.constant 8 : i32
    %14 = arith.muli %arg1, %c8_i32 : i32
    %15 = vector.broadcast %14 : i32 to vector<1x1x8xi32>
    %16 = arith.addi %13, %15 : vector<1x1x8xi32>
    %17 = tpu.iota {dimensions = array<i32: 0>} : vector<1x1x8xi32>
    %c1_i32 = arith.constant 1 : i32
    %18 = arith.muli %arg0, %c1_i32 : i32
    %19 = vector.broadcast %18 : i32 to vector<1x1x8xi32>
    %20 = arith.addi %17, %19 : vector<1x1x8xi32>
    %21 = arith.cmpi eq, %12, %1 : vector<1x1x8xi32>
    %c8_i32_6 = arith.constant 8 : i32
    %22 = vector.broadcast %c8_i32_6 : i32 to vector<1x1x8xi32>
    %23 = arith.cmpi slt, %16, %22 : vector<1x1x8xi32>
    %24 = arith.andi %21, %23 : vector<1x1x8xi1>
    %c1_i32_7 = arith.constant 1 : i32
    %25 = vector.broadcast %c1_i32_7 : i32 to vector<1x1x8xi32>
    %26 = arith.cmpi slt, %20, %25 : vector<1x1x8xi32>
    %27 = arith.andi %24, %26 : vector<1x1x8xi1>
    %28 = arith.extui %27 : vector<1x1x8xi1> to vector<1x1x8xi32>
    %29 = vector.shape_cast %28 : vector<1x1x8xi32> to vector<1x1x1x8xi32>
    %cst_8 = arith.constant dense<0> : vector<1xi32>
    %30 = vector.multi_reduction <add>, %29, %cst_8 [1, 2, 3] : vector<1x1x1x8xi32> to vector<1xi32>
    %31 = vector.shape_cast %30 : vector<1xi32> to vector<1x1x1x1xi32>
    %32 = vector.extract %31[0, 0, 0, 0] : i32 from vector<1x1x1x1xi32>
    %33 = vector.broadcast %32 : i32 to vector<1x1x8x128xi32>
    %c0_9 = arith.constant 0 : index
    %c0_10 = arith.constant 0 : index
    %c0_11 = arith.constant 0 : index
    %c0_12 = arith.constant 0 : index
    %34 = vector.load %arg4[%c0_9, %c0_10, %c0_11, %c0_12] : memref<1x1x8x128xi32, #tpu.memory_space<vmem>>, vector<1x1x8x128xi32>
    tpu.vector_store %arg4[%c0_9, %c0_10, %c0_11, %c0_12], %33 {strides = array<i32>} : memref<1x1x8x128xi32, #tpu.memory_space<vmem>>, vector<1x1x8x128xi32>,
    return
  }
  func.func @transform_0(%arg0: i32, %arg1: i32) -> (i32, i32, i32) {
    %c0_i32 = arith.constant 0 : i32
    %c0_i32_0 = arith.constant 0 : i32
    return %arg0, %c0_i32, %arg1 : i32, i32, i32
  }
  func.func @transform_1(%arg0: i32, %arg1: i32) -> (i32, i32, i32) {
    %c0_i32 = arith.constant 0 : i32
    %c0_i32_0 = arith.constant 0 : i32
    return %arg0, %c0_i32, %arg1 : i32, i32, i32
  }
  func.func @transform_2(%arg0: i32, %arg1: i32) -> (i32, i32, i32, i32) {
    %c0_i32 = arith.constant 0 : i32
    %c0_i32_0 = arith.constant 0 : i32
    %c0_i32_1 = arith.constant 0 : i32
    return %arg0, %arg1, %c0_i32, %c0_i32_0 : i32, i32, i32, i32
  }
}

</mosaic_0001>

<llo_original>
// kernel: tpu_custom_call.1
$region0: #{tpu_custom_call.1}
  #allocation0 [shape = 'u32[]', space=smem, size = 0x4, offset = 0x4, fixed_abs, tag = 'smem constant byte address 0x4 - core index']
  #allocation1 [shape = 'u32[144,128]{1,0:T(1,128)}', space=vmem, size = 0x12000, scoped, tag = 'internal scratch']
  %s0 = inlined_call_operand.vmem [shape: f32[1,10,8], index: 0, kind: input, shape index: {}]
  %s1 = inlined_call_operand.vmem [shape: s32[1,1,8], index: 1, kind: input, shape index: {}]
  %s2 = inlined_call_operand.hbm [shape: s32[1,1,8,128], index: 2, kind: output, shape index: {}]
  %s3 = sld [smem:[#allocation0]]
  $region18: #{tpu_custom_call.1} parent=0
    _
  %s5 = ssub.s32 1, %s3
  %s6 = scalar_select 0, %s5, %s3
  $region1: #{tpu_custom_call.1} parent=0
    #allocation2 [shape = 'u8[4096]{0}', space=vmem, size = 0x1000, scoped, tag = 'output window, operand 0, single buffered']
    #allocation3 [shape = 's32[1]{0}', space=sflag, size = 0x4, scoped, tag = 'scoped memory for tpu_custom_call.1']
    %7 = vsyncpa [#allocation3], 0
    // Predicated region
    $region2: #{tpu_custom_call.1} parent=1 // pred_check
      _
    $region3: #{tpu_custom_call.1} parent=1 // pred_check_branch
      %9 = sbr.rel (0) target = $region5
    $region4: #{tpu_custom_call.1} parent=1 // pred_region
      _
    $region5: #{tpu_custom_call.1} parent=1 // pred_fallthru
      _
    // Predicated region
    $region6: #{tpu_custom_call.1} parent=1 // pred_check
      _
    $region7: #{tpu_custom_call.1} parent=1 // pred_check_branch
      %11 = sbr.rel (0) target = $region9
    $region8: #{tpu_custom_call.1} parent=1 // pred_region
      _
    $region9: #{tpu_custom_call.1} parent=1 // pred_fallthru
      _
    %v12 = vld [vmem:[%s0] sm:$0xff]
    %v13 = vld [vmem:[%s0 + $0x8] sm:$0x3]
    %v14 = vld [vmem:[%s1] sm:$0x1]
    %vm15 = vcmask 64512
    %v16 = vsel %vm15, %v12, -inf
    %vm17 = vcmask 58368
    %v18 = vsel %vm17, %v13, -inf
    %v19 = vmax.f32 %v16, %v18
    %v20 = vrot.slane %v19, 4
    %v21 = vmax.f32 %v19, %v20
    %v22 = vrot.slane %v21, 2
    %v23 = vmax.f32 %v21, %v22
    %v24 = vrot.slane %v23, 1
    %v25 = vmax.f32 %v23, %v24
    %vm26 = vcmp.eq.f32.partialorder %v12, %v25
    %vm27 = vcmp.eq.f32.partialorder %v13, %v25
    %vm28 = vcmp.ne.f32.partialorder %v12, %v12
    %vm29 = vcmp.ne.f32.partialorder %v13, %v13
    %vm30 = vmor %vm26, %vm28
    %vm31 = vmor %vm27, %vm29
    %v32 = vlaneseq
    %v33 = vshrl.u32 %v32, 7
    %v34 = vadd.s32 %v33, 8
    %v35 = vsel %vm30, %v33, 10
    %v36 = vsel %vm31, %v34, 10
    %v37 = vsel %vm15, %v35, 2147483647
    %v38 = vsel %vm17, %v36, 2147483647
    %vm39 = vcmp.lt.s32.totalorder %v37, %v38
    %v40 = vsel %vm39, %v37, %v38
    %v41 = vrot.slane %v40, 4
    %vm42 = vcmp.lt.s32.totalorder %v40, %v41
    %v43 = vsel %vm42, %v40, %v41
    %v44 = vrot.slane %v43, 2
    %vm45 = vcmp.lt.s32.totalorder %v43, %v44
    %v46 = vsel %vm45, %v43, %v44
    %v47 = vrot.slane %v46, 1
    %vm48 = vcmp.lt.s32.totalorder %v46, %v47
    %v49 = vsel %vm48, %v46, %v47
    %v50 = vlaneseq
    %v51 = vand.u32 %v50, 127
    %s52 = smul.u32 0, 8
    %v53 = vstv %s52
    %v54 = vadd.s32 %v51, %v53
    %v55 = vstv 0
    %vm56 = vcmp.eq.s32.totalorder %v49, %v14
    %vm57 = vcmp.lt.s32.totalorder %v54, 8
    %vm58 = vmand %vm56, %vm57
    %vm59 = vcmp.lt.s32.totalorder %v55, 1
    %vm60 = vmand %vm58, %vm59
    %v61 = vsel %vm60, 1, 0
    %vm62 = vcmask 57344
    %v63 = vsel %vm62, %v61, 0
    %v64 = vand.u32 %v63, 65535
    %v65 = vshrl.u32 %v63, 16
    %v66 = vcvt.s32.f32 %v64
    %v67 = vcvt.s32.f32 %v65
    %68 = vadd.xlane.f32.xlu0 %v66
    %v69 = vpop.xlane.xlu0 %68
    %70 = vadd.xlane.f32.xlu0 %v67
    %v71 = vpop.xlane.xlu0 %70
    %v72 = vcvt.f32.s32 %v69
    %v73 = vcvt.f32.s32 %v71
    %v74 = vshll.u32 %v73, 16
    %v75 = vadd.s32 %v74, %v72
    %v76 = vrot.slane %v75, 4
    %v77 = vadd.s32 %v75, %v76
    %v78 = vrot.slane %v77, 2
    %v79 = vadd.s32 %v77, %v78
    %v80 = vrot.slane %v79, 1
    %v81 = vadd.s32 %v79, %v80
    %s82 = vtos %v81
    %v83 = vstv %s82
    %84 = vst [vmem:[#allocation2] sm:$0xff] %v83
    // Predicated region
    $region10: #{tpu_custom_call.1} parent=1 // pred_check
      _
    $region11: #{tpu_custom_call.1} parent=1 // pred_check_branch
      %86 = sbr.rel (0) target = $region13
    $region12: #{tpu_custom_call.1} parent=1 // pred_region
      %s88 = ssub.s32 128, 128
      %89 = vsyncadd [#allocation3], %s88
      %s91 = sshll.u32 [#allocation2], 4
      %s92 = int_to_ptr.vmem [resolvable:$true] %s91
      %94 = dma.vmem_to_hbm [thread:$0]  %s92, 128, %s2, [#allocation3]
    $region13: #{tpu_custom_call.1} parent=1 // pred_fallthru
      _
    // Predicated region
    $region14: #{tpu_custom_call.1} parent=1 // pred_check
      _
    $region15: #{tpu_custom_call.1} parent=1 // pred_check_branch
      %96 = sbr.rel (0) target = $region17
    $region16: #{tpu_custom_call.1} parent=1 // pred_region
      %97 = dma.done [#allocation3], 128
    $region17: #{tpu_custom_call.1} parent=1 // pred_fallthru
      _
    %98 = vsyncpa [#allocation3], 1

</llo_original>
